<compile_context>
chip_gen: v6e
topology: v6e:2x2x1
jax: 0.10.0
libtpu: 0.0.40
codegen_flags: <defaults>
</compile_context>

<pallas_src>
import functools

import jax
import jax.numpy as jnp
from jax.experimental import pallas as pl
from jax.experimental.pallas import tpu as pltpu


def _round_up(x, m):
    return (x + m - 1) // m * m


def _vmem_budgets():
    """Generation-aware (max_tile_bytes, vmem_limit_bytes, fused_budget_bytes)."""
    cap = 64 << 20                                        # conservative default (v7x)
    try:
        cap = int(getattr(pltpu.get_tpu_info(), "vmem_capacity_bytes", cap))
    except Exception:
        pass
    if cap >= (96 << 20):                                 # v5e / v6e: 128 MiB VMEM
        return 8 << 20, 96 << 20, 32 << 20
    return 4 << 20, 48 << 20, 16 << 20                    # v7x: 64 MiB VMEM


# --------------------------------------------------------------------------
# Fused single-pass kernel: x resident in VMEM, 1 HBM read + 1 HBM write.
# Block layout (B, C, HW): B-sum is pure VPU adds, lane reduce once per call.
# --------------------------------------------------------------------------
def _fused_bn_kernel(x_ref, gamma_ref, beta_ref, o_ref, *, eps, n, inv_nm1):
    x = x_ref[...].astype(jnp.float32)                    # (B, C, HW)
    xb = jnp.sum(x, axis=0)                               # (C, HW)   VPU adds over B
    x2b = jnp.sum(x * x, axis=0)                          # (C, HW)
    s = jnp.sum(xb, axis=1, keepdims=True)                # (C, 1)    lane reduce (XLU)
    sq = jnp.sum(x2b, axis=1, keepdims=True)              # (C, 1)
    mean = s * (1.0 / n)
    var = jnp.maximum((sq - n * mean * mean) * inv_nm1, 0.0)   # clamp: no NaN from rsqrt
    inv_std = jax.lax.rsqrt(var + eps)                    # EUP slot
    scale = gamma_ref[...] * inv_std                      # (C, 1)
    shift = beta_ref[...] - mean * scale
    o_ref[...] = (x * scale + shift).astype(o_ref.dtype)  # x still resident in VMEM


# --------------------------------------------------------------------------
# Tiled pass 1: per-(b,c)-row sum / sumsq, accumulated into the resident
# output block across the HW (reduction, innermost, "arbitrary") axis.
# --------------------------------------------------------------------------
def _row_stats_kernel(x_ref, sum_ref, sq_ref):
    j = pl.program_id(1)

    @pl.when(j == 0)
    def _init():
        sum_ref[...] = jnp.zeros_like(sum_ref)
        sq_ref[...] = jnp.zeros_like(sq_ref)

    x = x_ref[...].astype(jnp.float32)                    # (tr, thw)
    sum_ref[...] += jnp.sum(x, axis=1, keepdims=True)     # (tr, 1)
    sq_ref[...] += jnp.sum(x * x, axis=1, keepdims=True)  # (tr, 1)


# --------------------------------------------------------------------------
# Tiled pass 2: y = x * scale[row] + shift[row]   (lane-dense, fully parallel)
# --------------------------------------------------------------------------
def _normalize_kernel(scale_ref, shift_ref, x_ref, o_ref):
    x = x_ref[...].astype(jnp.float32)                    # (tr, thw)
    o_ref[...] = (x * scale_ref[...] + shift_ref[...]).astype(o_ref.dtype)


def _pick_tiles(n_rows, hw, itemsize, max_tile_bytes):
    """Pick (tr, thw): blocks obey the (8,128) rule AND stay within the budget."""
    if hw % 128 == 0:
        thw_cands = [t for t in range(128, hw + 1, 128) if hw % t == 0]
    else:
        # Full-dim lane block is always layout-legal; bound bytes via row tiling.
        # TODO(synk): pad/mask the HW tail to regain lane tiling for huge,
        # non-128-aligned spatial extents.
        thw_cands = [hw]
    tr_cands = [t for t in range(8, n_rows + 1, 8) if n_rows % t == 0]
    if not tr_cands or tr_cands[-1] != n_rows:
        tr_cands = tr_cands + [n_rows]

    min_tr = tr_cands[0]
    # Widest lane tile whose minimum-height block still fits the budget.
    fitting = [t for t in thw_cands if min_tr * t * itemsize <= max_tile_bytes]
    thw = fitting[-1] if fitting else thw_cands[0]
    # Never shrink DMA rows below ~2 KiB just to satisfy the byte budget
    # (short strided bursts under-utilize HBM).
    row_floor = min(hw, max(128, 2048 // itemsize))
    bigger = [t for t in thw_cands if t >= row_floor]
    if bigger and thw < bigger[0]:
        thw = bigger[0]
    # Tallest row tile that fits with the chosen row width.
    fit_tr = [t for t in tr_cands if t * thw * itemsize <= max_tile_bytes]
    tr = fit_tr[-1] if fit_tr else tr_cands[0]
    # Prefer >=2 row blocks so the "parallel" row axis can shard across the two
    # TensorCores on v7x, as long as blocks stay reasonably large.
    if n_rows // tr == 1:
        smaller = [t for t in tr_cands
                   if t < tr and t * thw * itemsize >= (128 << 10)]
        if smaller:
            tr = smaller[-1]
    return tr, thw


def batch_norm_conv(x_nchw, gamma, beta, eps=1e-8, *, force_tiled=False,
                    max_tile_bytes=None):
    """Forward pass of BatchNormConv. x_nchw: (B, C, H, W) -> (B, C, H, W)."""
    B, C, H, W = x_nchw.shape
    HW = H * W
    R = B * C
    N = B * HW
    itemsize = jnp.dtype(x_nchw.dtype).itemsize

    tile_budget, vmem_limit, fused_budget = _vmem_budgets()
    if max_tile_bytes is None:
        max_tile_bytes = tile_budget

    n = float(N)
    inv_nm1 = 1.0 / float(max(N - 1, 1))                  # unbiased var; guard N == 1
    gamma_f32 = gamma.astype(jnp.float32)
    beta_f32 = beta.astype(jnp.float32)

    # ---------------- fused single-pass path (x fits in VMEM) ----------------
    padded_bytes = B * _round_up(C, 8) * _round_up(HW, 128) * itemsize
    if (not force_tiled) and 2 * padded_bytes <= fused_budget:
        x3 = x_nchw.reshape(B, C, HW)                     # free reshape of NCHW
        y3 = pl.pallas_call(
            functools.partial(_fused_bn_kernel, eps=float(eps), n=n,
                              inv_nm1=inv_nm1),
            out_shape=jax.ShapeDtypeStruct((B, C, HW), x_nchw.dtype),
            grid=(1,),
            in_specs=[
                pl.BlockSpec((B, C, HW), lambda i: (0, 0, 0)),
                pl.BlockSpec((C, 1), lambda i: (0, 0)),
                pl.BlockSpec((C, 1), lambda i: (0, 0)),
            ],
            out_specs=pl.BlockSpec((B, C, HW), lambda i: (0, 0, 0)),
            compiler_params=pltpu.CompilerParams(
                dimension_semantics=("arbitrary",),
                vmem_limit_bytes=vmem_limit),
        )(x3, gamma_f32.reshape(C, 1), beta_f32.reshape(C, 1))
        return y3.reshape(B, C, H, W)

    # ---------------- tiled two-pass path: (B*C, HW) packing -----------------
    x2 = x_nchw.reshape(R, HW)                            # free reshape, full density
    tr, thw = _pick_tiles(R, HW, itemsize, max_tile_bytes)
    grid = (R // tr, HW // thw)

    # Pass 1: per-row sum / sumsq (row axis parallel, HW reduction arbitrary).
    row_sum, row_sq = pl.pallas_call(
        _row_stats_kernel,
        out_shape=(jax.ShapeDtypeStruct((R, 1), jnp.float32),
                   jax.ShapeDtypeStruct((R, 1), jnp.float32)),
        grid=grid,
        in_specs=[pl.BlockSpec((tr, thw), lambda i, j: (i, j))],
        out_specs=(pl.BlockSpec((tr, 1), lambda i, j: (i, 0)),
                   pl.BlockSpec((tr, 1), lambda i, j: (i, 0))),
        compiler_params=pltpu.CompilerParams(
            dimension_semantics=("parallel", "arbitrary"),
            vmem_limit_bytes=vmem_limit),
    )(x2)

    # Tiny fold over B + scale/shift finalize in plain JAX (negligible work).
    ch_sum = jnp.sum(row_sum.reshape(B, C), axis=0)       # (C,)
    ch_sq = jnp.sum(row_sq.reshape(B, C), axis=0)         # (C,)
    mean = ch_sum / n
    var = jnp.maximum((ch_sq - n * mean * mean) * inv_nm1, 0.0)
    inv_std = jax.lax.rsqrt(var + jnp.float32(eps))
    scale = gamma_f32 * inv_std                           # (C,)
    shift = beta_f32 - mean * scale                       # (C,)
    scale_rows = jnp.broadcast_to(scale[None, :], (B, C)).reshape(R, 1)
    shift_rows = jnp.broadcast_to(shift[None, :], (B, C)).reshape(R, 1)

    # Pass 2: fully parallel, lane-dense elementwise normalize.
    y2 = pl.pallas_call(
        _normalize_kernel,
        out_shape=jax.ShapeDtypeStruct((R, HW), x_nchw.dtype),
        grid=grid,
        in_specs=[
            pl.BlockSpec((tr, 1), lambda i, j: (i, 0)),
            pl.BlockSpec((tr, 1), lambda i, j: (i, 0)),
            pl.BlockSpec((tr, thw), lambda i, j: (i, j)),
        ],
        out_specs=pl.BlockSpec((tr, thw), lambda i, j: (i, j)),
        compiler_params=pltpu.CompilerParams(
            dimension_semantics=("parallel", "parallel"),
            vmem_limit_bytes=vmem_limit),
    )(scale_rows, shift_rows, x2)

    return y2.reshape(B, C, H, W)


# --------------------------------------------------------------------------
def _reference(x, gamma, beta, eps):
    """Literal port of the PyTorch forward (unbiased variance)."""
    mean = jnp.mean(x, axis=(0, 2, 3))
    var = jnp.var(x, axis=(0, 2, 3), ddof=1)
    x_nhwc = jnp.transpose(x, (0, 2, 3, 1))
    y = gamma * ((x_nhwc - mean) / jnp.sqrt(var + eps)) + beta
    return jnp.transpose(y, (0, 3, 1, 2))


if __name__ == "__main__":
    # 1) Shape implied by the module (batch=2, channels=4, spatial=16):
    #    exercises the fused, VMEM-resident single-pass path.
    B, C, H, W = 2, 4, 16, 16
    gamma = jnp.ones((C,), dtype=jnp.float32)             # nn.init.ones_
    beta = jnp.zeros((C,), dtype=jnp.float32)             # nn.init.zeros_
    x = jax.random.normal(jax.random.PRNGKey(0), (B, C, H, W), dtype=jnp.float32)
    y = jax.block_until_ready(batch_norm_conv(x, gamma, beta, eps=1e-8))
    assert y.shape == x.shape and y.dtype == x.dtype
    assert jnp.allclose(y, _reference(x, gamma, beta, 1e-8), atol=1e-4, rtol=1e-4)

    # 2) Forced tiled two-pass path with a small tile budget: exercises
    #    multi-step accumulation, the parallel row axis and the JAX combine.
    B2, C2, H2, W2 = 2, 8, 32, 32
    g2 = 0.5 + 0.25 * jnp.arange(C2, dtype=jnp.float32)
    b2 = -0.1 * jnp.arange(C2, dtype=jnp.float32)
    x2 = jax.random.normal(jax.random.PRNGKey(1), (B2, C2, H2, W2),
                           dtype=jnp.float32)
    y2 = jax.block_until_ready(
        batch_norm_conv(x2, g2, b2, eps=1e-8, force_tiled=True,
                        max_tile_bytes=16 * 1024))
    assert jnp.allclose(y2, _reference(x2, g2, b2, 1e-8), atol=1e-4, rtol=1e-4)

    # 3) Non-128-aligned spatial extent (full-HW lane blocks, row tiling only).
    B3, C3, H3, W3 = 2, 4, 12, 12
    g3 = 1.0 + 0.5 * jnp.arange(C3, dtype=jnp.float32)
    b3 = 0.2 * jnp.arange(C3, dtype=jnp.float32)
    x3 = jax.random.normal(jax.random.PRNGKey(2), (B3, C3, H3, W3),
                           dtype=jnp.float32)
    y3 = jax.block_until_ready(
        batch_norm_conv(x3, g3, b3, eps=1e-8, force_tiled=True))
    assert jnp.allclose(y3, _reference(x3, g3, b3, 1e-8), atol=1e-4, rtol=1e-4)

    print("KERNEL_OK")
</pallas_src>

<mosaic_0001>
module attributes {stable_mosaic.version = 11 : i64} {
  func.func @_fused_bn_kernel(%arg0: i32, %arg1: memref<2x4x256xf32, #tpu.memory_space<vmem>>, %arg2: memref<4x1xf32, #tpu.memory_space<vmem>>, %arg3: memref<4x1xf32, #tpu.memory_space<vmem>>, %arg4: memref<2x4x256xf32, #tpu.memory_space<vmem>>) attributes {dimension_semantics = [#tpu.dimension_semantics<arbitrary>], iteration_bounds = array<i64: 1>, scalar_prefetch = 0 : i64, scratch_operands = 0 : i64, tpu.core_type = #tpu.core_type<tc>, window_params = [{pipeline_mode = #tpu.pipeline_mode<synchronous>, transform_indices = @transform_0, window_bounds = array<i64: 2, 4, 256>}, {pipeline_mode = #tpu.pipeline_mode<synchronous>, transform_indices = @transform_1, window_bounds = array<i64: 4, 1>}, {pipeline_mode = #tpu.pipeline_mode<synchronous>, transform_indices = @transform_2, window_bounds = array<i64: 4, 1>}, {pipeline_mode = #tpu.pipeline_mode<synchronous>, transform_indices = @transform_3, window_bounds = array<i64: 2, 4, 256>}]} {
    %c0 = arith.constant 0 : index
    %c0_0 = arith.constant 0 : index
    %c0_1 = arith.constant 0 : index
    %0 = vector.load %arg1[%c0, %c0_0, %c0_1] : memref<2x4x256xf32, #tpu.memory_space<vmem>>, vector<2x4x256xf32>
    %cst = arith.constant dense<0.000000e+00> : vector<4x256xf32>
    %1 = vector.multi_reduction <add>, %0, %cst [0] : vector<2x4x256xf32> to vector<4x256xf32>
    %2 = arith.mulf %0, %0 : vector<2x4x256xf32>
    %cst_2 = arith.constant dense<0.000000e+00> : vector<4x256xf32>
    %3 = vector.multi_reduction <add>, %2, %cst_2 [0] : vector<2x4x256xf32> to vector<4x256xf32>
    %cst_3 = arith.constant dense<0.000000e+00> : vector<4xf32>
    %4 = vector.multi_reduction <add>, %1, %cst_3 [1] : vector<4x256xf32> to vector<4xf32>
    %5 = vector.shape_cast %4 : vector<4xf32> to vector<4x1xf32>
    %cst_4 = arith.constant dense<0.000000e+00> : vector<4xf32>
    %6 = vector.multi_reduction <add>, %3, %cst_4 [1] : vector<4x256xf32> to vector<4xf32>
    %7 = vector.shape_cast %6 : vector<4xf32> to vector<4x1xf32>
    %cst_5 = arith.constant 0.001953125 : f32
    %8 = vector.broadcast %cst_5 : f32 to vector<4x1xf32>
    %9 = arith.mulf %5, %8 : vector<4x1xf32>
    %cst_6 = arith.constant 5.120000e+02 : f32
    %10 = vector.broadcast %cst_6 : f32 to vector<4x1xf32>
    %11 = arith.mulf %10, %9 : vector<4x1xf32>
    %12 = arith.mulf %11, %9 : vector<4x1xf32>
    %13 = arith.subf %7, %12 : vector<4x1xf32>
    %cst_7 = arith.constant 0.00195694715 : f32
    %14 = vector.broadcast %cst_7 : f32 to vector<4x1xf32>
    %15 = arith.mulf %13, %14 : vector<4x1xf32>
    %cst_8 = arith.constant 0.000000e+00 : f32
    %16 = vector.broadcast %cst_8 : f32 to vector<4x1xf32>
    %17 = arith.maximumf %15, %16 : vector<4x1xf32>
    %cst_9 = arith.constant 9.99999993E-9 : f32
    %18 = vector.broadcast %cst_9 : f32 to vector<4x1xf32>
    %19 = arith.addf %17, %18 : vector<4x1xf32>
    %20 = math.rsqrt %19 : vector<4x1xf32>
    %c0_10 = arith.constant 0 : index
    %c0_11 = arith.constant 0 : index
    %21 = vector.load %arg2[%c0_10, %c0_11] : memref<4x1xf32, #tpu.memory_space<vmem>>, vector<4x1xf32>
    %22 = arith.mulf %21, %20 : vector<4x1xf32>
    %c0_12 = arith.constant 0 : index
    %c0_13 = arith.constant 0 : index
    %23 = vector.load %arg3[%c0_12, %c0_13] : memref<4x1xf32, #tpu.memory_space<vmem>>, vector<4x1xf32>
    %24 = arith.mulf %9, %22 : vector<4x1xf32>
    %25 = arith.subf %23, %24 : vector<4x1xf32>
    %26 = vector.shape_cast %22 : vector<4x1xf32> to vector<1x4x1xf32>
    %27 = vector.broadcast %26 : vector<1x4x1xf32> to vector<2x4x256xf32>
    %28 = arith.mulf %0, %27 : vector<2x4x256xf32>
    %29 = vector.shape_cast %25 : vector<4x1xf32> to vector<1x4x1xf32>
    %30 = vector.broadcast %29 : vector<1x4x1xf32> to vector<2x4x256xf32>
    %31 = arith.addf %28, %30 : vector<2x4x256xf32>
    %c0_14 = arith.constant 0 : index
    %c0_15 = arith.constant 0 : index
    %c0_16 = arith.constant 0 : index
    %32 = vector.load %arg4[%c0_14, %c0_15, %c0_16] : memref<2x4x256xf32, #tpu.memory_space<vmem>>, vector<2x4x256xf32>
    tpu.vector_store %arg4[%c0_14, %c0_15, %c0_16], %31 {strides = array<i32>} : memref<2x4x256xf32, #tpu.memory_space<vmem>>, vector<2x4x256xf32>,
    return
  }
  func.func @transform_0(%arg0: i32) -> (i32, i32, i32) {
    %c0_i32 = arith.constant 0 : i32
    %c0_i32_0 = arith.constant 0 : i32
    %c0_i32_1 = arith.constant 0 : i32
    %c0_i32_2 = arith.constant 0 : i32
    return %c0_i32, %c0_i32_0, %c0_i32_1 : i32, i32, i32
  }
  func.func @transform_1(%arg0: i32) -> (i32, i32) {
    %c0_i32 = arith.constant 0 : i32
    %c0_i32_0 = arith.constant 0 : i32
    %c0_i32_1 = arith.constant 0 : i32
    return %c0_i32, %c0_i32_0 : i32, i32
  }
  func.func @transform_2(%arg0: i32) -> (i32, i32) {
    %c0_i32 = arith.constant 0 : i32
    %c0_i32_0 = arith.constant 0 : i32
    %c0_i32_1 = arith.constant 0 : i32
    return %c0_i32, %c0_i32_0 : i32, i32
  }
  func.func @transform_3(%arg0: i32) -> (i32, i32, i32) {
    %c0_i32 = arith.constant 0 : i32
    %c0_i32_0 = arith.constant 0 : i32
    %c0_i32_1 = arith.constant 0 : i32
    %c0_i32_2 = arith.constant 0 : i32
    return %c0_i32, %c0_i32_0, %c0_i32_1 : i32, i32, i32
  }
}

</mosaic_0001>

<llo_original>
// kernel: tpu_custom_call.1
$region0: #{tpu_custom_call.1}
  #allocation0 [shape = 'u32[]', space=smem, size = 0x4, offset = 0x4, fixed_abs, tag = 'smem constant byte address 0x4 - core index']
  #allocation1 [shape = 'u32[144,128]{1,0:T(1,128)}', space=vmem, size = 0x12000, scoped, tag = 'internal scratch']
  %s0 = inlined_call_operand.hbm [shape: f32[2,4,256], index: 0, kind: input, shape index: {}]
  %s1 = inlined_call_operand.vmem [shape: f32[4,1], index: 1, kind: input, shape index: {}]
  %s2 = inlined_call_operand.vmem [shape: f32[4,1], index: 2, kind: input, shape index: {}]
  %s3 = inlined_call_operand.hbm [shape: f32[2,4,256], index: 3, kind: output, shape index: {}]
  %s4 = sld [smem:[#allocation0]]
  $region26: #{tpu_custom_call.1} parent=0
    _
  %s6 = ssub.s32 1, %s4
  %s7 = scalar_select 0, %s6, %s4
  $region1: #{tpu_custom_call.1} parent=0
    #allocation2 [shape = 'u8[8192]{0}', space=vmem, size = 0x2000, scoped, tag = 'input window, operand 0, single buffered']
    #allocation3 [shape = 's32[1]{0}', space=sflag, size = 0x4, scoped, tag = 'scoped memory for tpu_custom_call.1']
    #allocation4 [shape = 's32[1]{0}', space=sflag, size = 0x4, scoped, tag = 'scoped memory for tpu_custom_call.1']
    #allocation5 [shape = 'u8[8192]{0}', space=vmem, size = 0x2000, scoped, tag = 'output window, operand 0, single buffered']
    %8 = vsyncpa [#allocation3], 0
    %9 = vsyncpa [#allocation4], 0
    // Predicated region
    $region2: #{tpu_custom_call.1} parent=1 // pred_check
      _
    $region3: #{tpu_custom_call.1} parent=1 // pred_check_branch
      %11 = sbr.rel (0) target = $region5
    $region4: #{tpu_custom_call.1} parent=1 // pred_region
      %s13 = ssub.s32 256, 256
      %14 = vsyncadd [#allocation3], %s13
      %s15 = sshll.u32 [#allocation2], 4
      %s16 = int_to_ptr.vmem [resolvable:$true] %s15
      %21 = dma.hbm_to_vmem [thread:$0]  %s0, 256, %s16, [#allocation3], 128, 128, 8
    $region5: #{tpu_custom_call.1} parent=1 // pred_fallthru
      _
    // Predicated region
    $region6: #{tpu_custom_call.1} parent=1 // pred_check
      _
    $region7: #{tpu_custom_call.1} parent=1 // pred_check_branch
      %23 = sbr.rel (0) target = $region9
    $region8: #{tpu_custom_call.1} parent=1 // pred_region
      _
    $region9: #{tpu_custom_call.1} parent=1 // pred_fallthru
      _
    // Predicated region
    $region10: #{tpu_custom_call.1} parent=1 // pred_check
      _
    $region11: #{tpu_custom_call.1} parent=1 // pred_check_branch
      %25 = sbr.rel (0) target = $region13
    $region12: #{tpu_custom_call.1} parent=1 // pred_region
      _
    $region13: #{tpu_custom_call.1} parent=1 // pred_fallthru
      _
    // Predicated region
    $region14: #{tpu_custom_call.1} parent=1 // pred_check
      _
    $region15: #{tpu_custom_call.1} parent=1 // pred_check_branch
      %27 = sbr.rel (0) target = $region17
    $region16: #{tpu_custom_call.1} parent=1 // pred_region
      %28 = dma.done [#allocation3], 256
    $region17: #{tpu_custom_call.1} parent=1 // pred_fallthru
      _
    %v29 = vld [vmem:[#allocation2] sm:$0xff]
    %v30 = vld [vmem:[#allocation2 + $0x8] sm:$0xff]
    %v33 = vcombine.high %v29, %v29
    %v34 = vcombine.high %v30, %v30
    %vm37 = vcmask 1043456
    %v38 = vsel %vm37, %v29, 0.0
    %v39 = vsel %vm37, %v30, 0.0
    %v40 = vadd.f32 %v38, %v39
    %v41 = vsel %vm37, %v33, 0.0
    %v42 = vsel %vm37, %v34, 0.0
    %v43 = vadd.f32 %v41, %v42
    %v44 = vmul.f32 %v29, %v29
    %v45 = vmul.f32 %v30, %v30
    %v48 = vcombine.high %v44, %v44
    %v49 = vcombine.high %v45, %v45
    %v52 = vsel %vm37, %v44, 0.0
    %v53 = vsel %vm37, %v45, 0.0
    %v54 = vadd.f32 %v52, %v53
    %v55 = vsel %vm37, %v48, 0.0
    %v56 = vsel %vm37, %v49, 0.0
    %v57 = vadd.f32 %v55, %v56
    %v58 = vsel %vm37, %v40, 0.0
    %v59 = vsel %vm37, %v43, 0.0
    %v60 = vadd.f32 %v58, %v59
    %61 = vadd.xlane.f32.xlu0 %v60
    %v62 = vpop.xlane.xlu0 %61
    %v63 = vsel %vm37, %v54, 0.0
    %v64 = vsel %vm37, %v57, 0.0
    %v65 = vadd.f32 %v63, %v64
    %66 = vadd.xlane.f32.xlu0 %v65
    %v67 = vpop.xlane.xlu0 %66
    %v68 = vmul.f32 %v62, 0.001953125
    %v69 = vmul.f32 %v68, 512.0
    %v70 = vmul.f32 %v69, %v68
    %v71 = vsub.f32 %v67, %v70
    %v72 = vmul.f32 %v71, 0.0019569471
    %v73 = vmax.f32 %v72, 0.0
    %v74 = vadd.f32 %v73, 1e-08
    %v75 = vrsqrt.pop %v74
    %v76 = vld [vmem:[%s1] sm:$0xf]
    %v77 = vmul.f32 %v76, %v75
    %v78 = vld [vmem:[%s2] sm:$0xf]
    %v79 = vmul.f32 %v68, %v77
    %v80 = vsub.f32 %v78, %v79
    %82 = vset.pattern.permute.xlu0 0
    %83 = vperm.xlu0 %82, %v77
    %v84 = vpop.permute.xlu0 %83
    %v86 = vunpack.c.l.s4 839922192
    %v87 = vunpack.c.0.s8 %v86
    %v88 = vlaneseq
    %v89 = vshrl.u32 %v88, 7
    %v90 = vsub.s32 %v87, %v89
    %v91 = vrot.slane %v84, %v90
    %v93 = vmul.f32 %v29, %v91
    %v94 = vmul.f32 %v30, %v91
    %96 = vset.pattern.permute.xlu0 0
    %97 = vperm.xlu0 %96, %v80
    %v98 = vpop.permute.xlu0 %97
    %v100 = vunpack.c.l.s4 839922192
    %v101 = vunpack.c.0.s8 %v100
    %v102 = vlaneseq
    %v103 = vshrl.u32 %v102, 7
    %v104 = vsub.s32 %v101, %v103
    %v105 = vrot.slane %v98, %v104
    %v107 = vadd.f32 %v93, %v105
    %v108 = vadd.f32 %v94, %v105
    %109 = vst [vmem:[#allocation5] sm:$0xff] %v107
    %110 = vst [vmem:[#allocation5 + $0x8] sm:$0xff] %v108
    // Predicated region
    $region18: #{tpu_custom_call.1} parent=1 // pred_check
      _
    $region19: #{tpu_custom_call.1} parent=1 // pred_check_branch
      %112 = sbr.rel (0) target = $region21
    $region20: #{tpu_custom_call.1} parent=1 // pred_region
      %s114 = ssub.s32 256, 256
      %115 = vsyncadd [#allocation4], %s114
      %s116 = sshll.u32 [#allocation5], 4
      %s117 = int_to_ptr.vmem [resolvable:$true] %s116
      %122 = dma.vmem_to_hbm [thread:$0]  %s117, 256, %s3, [#allocation4], 128, 128, 8
    $region21: #{tpu_custom_call.1} parent=1 // pred_fallthru
      _
    // Predicated region
    $region22: #{tpu_custom_call.1} parent=1 // pred_check
      _
    $region23: #{tpu_custom_call.1} parent=1 // pred_check_branch
      %124 = sbr.rel (0) target = $region25
    $region24: #{tpu_custom_call.1} parent=1 // pred_region
      %125 = dma.done [#allocation4], 256
    $region25: #{tpu_custom_call.1} parent=1 // pred_fallthru
      _
    %126 = vsyncpa [#allocation3], 1
    %127 = vsyncpa [#allocation4], 1

</llo_original>
